<compile_context>
chip_gen: v6e
topology: v6e:2x2x1
jax: 0.10.0
libtpu: 0.0.40
codegen_flags: <defaults>
</compile_context>

<pallas_src>
import functools

import jax
import jax.numpy as jnp
from jax import lax
from jax.experimental import pallas as pl
from jax.experimental.pallas import tpu as pltpu


def _round_up(x, m):
    return (x + m - 1) // m * m


def _matching_kernel(v1_ref, v2_ref, w0_ref, b0_ref, w1_ref, b1_ref, out_ref,
                     *, chunk):
    """One batch tile, processed in `chunk`-row sub-chunks.

    v1_ref, v2_ref : (TB, A)   f32  input attribute vectors (TB % chunk == 0)
    w0_ref         : (A, H0)   bf16 first Linear weight  (VMEM-resident)
    b0_ref         : (1, H0)   f32  first Linear bias
    w1_ref         : (H0, H1)  bf16 second Linear weight (VMEM-resident)
    b1_ref         : (1, H1)   f32  second Linear bias
    out_ref        : (1, TB)   f32  lane-dense matching scores
    """
    TB = v1_ref.shape[0]

    # Weights/biases loaded once per grid step; loop-invariant for the chunks.
    w0 = w0_ref[...]
    b0 = b0_ref[...]
    w1 = w1_ref[...]
    b1 = b1_ref[...]

    def mlp_sigmoid(x_f32):
        # Cast MXU operands to bf16 in-kernel; accumulate in f32.
        h = jnp.dot(x_f32.astype(jnp.bfloat16), w0,
                    preferred_element_type=jnp.float32) + b0
        h = jnp.maximum(h, 0.0)                                    # ReLU (f32)
        o = jnp.dot(h.astype(jnp.bfloat16), w1,
                    preferred_element_type=jnp.float32) + b1
        return jax.nn.sigmoid(o)                                   # f32

    if chunk == TB:
        # Single sub-chunk: whole tile at once (small-batch path).
        s1 = mlp_sigmoid(v1_ref[...])
        s2 = mlp_sigmoid(v2_ref[...])
        score = jnp.sum(s1 * s2, axis=-1)                          # (TB,)
        out_ref[...] = jax.nn.sigmoid(score).reshape(1, TB)
    else:
        n_chunks = TB // chunk

        def body(c, carry):
            r = pl.multiple_of(c * chunk, chunk)
            s1 = mlp_sigmoid(v1_ref[pl.ds(r, chunk), :])
            s2 = mlp_sigmoid(v2_ref[pl.ds(r, chunk), :])
            score = jnp.sum(s1 * s2, axis=-1)                      # (chunk,)
            out_ref[:, pl.ds(r, chunk)] = (
                jax.nn.sigmoid(score).reshape(1, chunk))
            return carry

        lax.fori_loop(0, n_chunks, body, 0)


def matching_model(vec1, vec2, w0, b0, w1, b1, *, max_tile=16384, chunk=512):
    """Pallas forward for MatchingModel.

    vec1, vec2 : (B, A) f32
    w0 : (A, H0), b0 : (H0,)   -- torch Linear weight transposed
    w1 : (H0, H1), b1 : (H1,)
    returns (B,) f32
    """
    B, A = vec1.shape
    H0 = w0.shape[1]
    H1 = w1.shape[1]
    assert chunk % 128 == 0, "chunk must be a multiple of 128 (lane width)"

    v1 = vec1.astype(jnp.float32)
    v2 = vec2.astype(jnp.float32)
    w0b = w0.astype(jnp.bfloat16)
    w1b = w1.astype(jnp.bfloat16)
    b0f = b0.reshape(1, H0).astype(jnp.float32)
    b1f = b1.reshape(1, H1).astype(jnp.float32)

    # ---- batch-tile sizing -------------------------------------------------
    # Cap TB so the double-buffered f32 input tiles stay within ~20 MiB of
    # VMEM (safe for v7x's 64 MiB physical / 32 MiB scoped default).
    tb_cap = max(((20 << 20) // (2 * 2 * A * 4)) // chunk * chunk, chunk)
    tile_hi = max(min(max_tile, tb_cap) // chunk * chunk, chunk)

    if B <= chunk:
        # Single tile == full array: no divisibility constraints apply.
        TB, CH = B, B
    else:
        # Keep >= 2 grid steps (v7x dual-TC sharding); TB a multiple of chunk.
        TB = min(tile_hi, _round_up(pl.cdiv(B, 2), chunk))
        CH = chunk
    num_tiles = pl.cdiv(B, TB)
    Bp = num_tiles * TB                      # output padded to whole tiles

    vmem_limit = int(min(max(
        2 * 2 * TB * A * 4                   # vec1/vec2, double-buffered, f32
        + 2 * TB * 4                         # output tile, double-buffered
        + 4 * (A * H0 + H0 * H1)             # bf16 weights (double-buffered)
        + 8 * (H0 + H1)                      # f32 biases
        + (8 << 20),                         # chunk intermediates + headroom
        32 << 20), 64 << 20))

    out = pl.pallas_call(
        functools.partial(_matching_kernel, chunk=CH),
        out_shape=jax.ShapeDtypeStruct((1, Bp), jnp.float32),
        grid=(num_tiles,),
        in_specs=[
            pl.BlockSpec((TB, A), lambda i: (i, 0)),     # vec1 tile
            pl.BlockSpec((TB, A), lambda i: (i, 0)),     # vec2 tile
            pl.BlockSpec((A, H0), lambda i: (0, 0)),     # w0 (VMEM-resident)
            pl.BlockSpec((1, H0), lambda i: (0, 0)),     # b0 (VMEM-resident)
            pl.BlockSpec((H0, H1), lambda i: (0, 0)),    # w1 (VMEM-resident)
            pl.BlockSpec((1, H1), lambda i: (0, 0)),     # b1 (VMEM-resident)
        ],
        out_specs=pl.BlockSpec((1, TB), lambda i: (0, i)),
        compiler_params=pltpu.CompilerParams(
            dimension_semantics=("parallel",),
            vmem_limit_bytes=vmem_limit),
    )(v1, v2, w0b, b0f, w1b, b1f)

    return out[0, :B]


matching_model_jit = jax.jit(matching_model, static_argnames=("max_tile", "chunk"))


def reference(vec1, vec2, w0, b0, w1, b1):
    """Pure-JAX f32 reference mirroring the PyTorch forward."""
    def mlp(x):
        h = jnp.maximum(x @ w0 + b0.reshape(1, -1), 0.0)
        return h @ w1 + b1.reshape(1, -1)
    s1 = jax.nn.sigmoid(mlp(vec1))
    s2 = jax.nn.sigmoid(mlp(vec2))
    return jax.nn.sigmoid(jnp.sum(s1 * s2, axis=-1))


if __name__ == "__main__":
    # Small shapes consistent with MatchingModel(num_attributes=32, out_dims=(64, 32)).
    B = 8
    NUM_ATTRIBUTES = 32
    OUT_DIMS = (64, 32)

    key = jax.random.PRNGKey(0)
    k_v1, k_v2, k_w0, k_b0, k_w1, k_b1, k_big = jax.random.split(key, 7)

    vec1 = jax.random.normal(k_v1, (B, NUM_ATTRIBUTES), jnp.float32)
    vec2 = jax.random.normal(k_v2, (B, NUM_ATTRIBUTES), jnp.float32)

    # Deterministic synthetic parameters (torch Linear weight is (out, in); stored (in, out)).
    w0 = jax.random.normal(k_w0, (NUM_ATTRIBUTES, OUT_DIMS[0]), jnp.float32) * 0.1
    b0 = jax.random.normal(k_b0, (OUT_DIMS[0],), jnp.float32) * 0.1
    w1 = jax.random.normal(k_w1, (OUT_DIMS[0], OUT_DIMS[1]), jnp.float32) * 0.1
    b1 = jax.random.normal(k_b1, (OUT_DIMS[1],), jnp.float32) * 0.1

    out = matching_model_jit(vec1, vec2, w0, b0, w1, b1)
    out = jax.block_until_ready(out)
    ref = reference(vec1, vec2, w0, b0, w1, b1)
    assert out.shape == (B,), out.shape
    assert jnp.allclose(out, ref, atol=2e-2, rtol=2e-2), (out, ref)

    # Larger, tile-misaligned batch: exercises the multi-tile grid, resident
    # weights, the ragged tail (no wrapper-side padding) and the inner
    # sub-chunk loop (3 chunks per 1536-row tile).
    B2 = 3000
    k_a, k_b2 = jax.random.split(k_big)
    v1_big = jax.random.normal(k_a, (B2, NUM_ATTRIBUTES), jnp.float32)
    v2_big = jax.random.normal(k_b2, (B2, NUM_ATTRIBUTES), jnp.float32)
    out2 = matching_model_jit(v1_big, v2_big, w0, b0, w1, b1)
    out2 = jax.block_until_ready(out2)
    ref2 = reference(v1_big, v2_big, w0, b0, w1, b1)
    assert out2.shape == (B2,), out2.shape
    assert jnp.allclose(out2, ref2, atol=2e-2, rtol=2e-2), float(
        jnp.max(jnp.abs(out2 - ref2)))

    print("KERNEL_OK")
</pallas_src>

<mosaic_0001>
module attributes {stable_mosaic.version = 11 : i64} {
  func.func @_matching_kernel(%arg0: i32, %arg1: memref<8x32xf32, #tpu.memory_space<vmem>>, %arg2: memref<8x32xf32, #tpu.memory_space<vmem>>, %arg3: memref<32x64xbf16, #tpu.memory_space<vmem>>, %arg4: memref<1x64xf32, #tpu.memory_space<vmem>>, %arg5: memref<64x32xbf16, #tpu.memory_space<vmem>>, %arg6: memref<1x32xf32, #tpu.memory_space<vmem>>, %arg7: memref<1x8xf32, #tpu.memory_space<vmem>>) attributes {dimension_semantics = [#tpu.dimension_semantics<parallel>], iteration_bounds = array<i64: 1>, scalar_prefetch = 0 : i64, scratch_operands = 0 : i64, tpu.core_type = #tpu.core_type<tc>, window_params = [{transform_indices = @transform_0, window_bounds = array<i64: 8, 32>}, {transform_indices = @transform_1, window_bounds = array<i64: 8, 32>}, {pipeline_mode = #tpu.pipeline_mode<synchronous>, transform_indices = @transform_2, window_bounds = array<i64: 32, 64>}, {pipeline_mode = #tpu.pipeline_mode<synchronous>, transform_indices = @transform_3, window_bounds = array<i64: 1, 64>}, {pipeline_mode = #tpu.pipeline_mode<synchronous>, transform_indices = @transform_4, window_bounds = array<i64: 64, 32>}, {pipeline_mode = #tpu.pipeline_mode<synchronous>, transform_indices = @transform_5, window_bounds = array<i64: 1, 32>}, {transform_indices = @transform_6, window_bounds = array<i64: 1, 8>}]} {
    %c0 = arith.constant 0 : index
    %c0_0 = arith.constant 0 : index
    %0 = vector.load %arg3[%c0, %c0_0] : memref<32x64xbf16, #tpu.memory_space<vmem>>, vector<32x64xbf16>
    %c0_1 = arith.constant 0 : index
    %c0_2 = arith.constant 0 : index
    %1 = vector.load %arg4[%c0_1, %c0_2] : memref<1x64xf32, #tpu.memory_space<vmem>>, vector<1x64xf32>
    %c0_3 = arith.constant 0 : index
    %c0_4 = arith.constant 0 : index
    %2 = vector.load %arg5[%c0_3, %c0_4] : memref<64x32xbf16, #tpu.memory_space<vmem>>, vector<64x32xbf16>
    %c0_5 = arith.constant 0 : index
    %c0_6 = arith.constant 0 : index
    %3 = vector.load %arg6[%c0_5, %c0_6] : memref<1x32xf32, #tpu.memory_space<vmem>>, vector<1x32xf32>
    %c0_7 = arith.constant 0 : index
    %c0_8 = arith.constant 0 : index
    %4 = vector.load %arg1[%c0_7, %c0_8] : memref<8x32xf32, #tpu.memory_space<vmem>>, vector<8x32xf32>
    %5 = arith.truncf %4 : vector<8x32xf32> to vector<8x32xbf16>
    %cst = arith.constant dense<0.000000e+00> : vector<8x64xf32>
    %6 = tpu.matmul %5, %0, %cst {dimension_numbers = #tpu.dot_dimension_numbers<[1], [0], [0], [1], [0, 0, 1, 1], [], []>} : vector<8x32xbf16>, vector<32x64xbf16>, vector<8x64xf32> -> vector<8x64xf32>
    %7 = vector.broadcast %1 : vector<1x64xf32> to vector<8x64xf32>
    %8 = arith.addf %6, %7 : vector<8x64xf32>
    %cst_9 = arith.constant 0.000000e+00 : f32
    %9 = vector.broadcast %cst_9 : f32 to vector<8x64xf32>
    %10 = arith.maximumf %8, %9 : vector<8x64xf32>
    %11 = arith.truncf %10 : vector<8x64xf32> to vector<8x64xbf16>
    %cst_10 = arith.constant dense<0.000000e+00> : vector<8x32xf32>
    %12 = tpu.matmul %11, %2, %cst_10 {dimension_numbers = #tpu.dot_dimension_numbers<[1], [0], [0], [1], [0, 0, 1, 1], [], []>} : vector<8x64xbf16>, vector<64x32xbf16>, vector<8x32xf32> -> vector<8x32xf32>
    %13 = vector.broadcast %3 : vector<1x32xf32> to vector<8x32xf32>
    %14 = arith.addf %12, %13 : vector<8x32xf32>
    %15 = arith.negf %14 : vector<8x32xf32>
    %16 = math.exp %15 : vector<8x32xf32>
    %cst_11 = arith.constant 1.000000e+00 : f32
    %17 = vector.broadcast %cst_11 : f32 to vector<8x32xf32>
    %18 = arith.addf %17, %16 : vector<8x32xf32>
    %19 = arith.divf %17, %18 : vector<8x32xf32>
    %c0_12 = arith.constant 0 : index
    %c0_13 = arith.constant 0 : index
    %20 = vector.load %arg2[%c0_12, %c0_13] : memref<8x32xf32, #tpu.memory_space<vmem>>, vector<8x32xf32>
    %21 = arith.truncf %20 : vector<8x32xf32> to vector<8x32xbf16>
    %cst_14 = arith.constant dense<0.000000e+00> : vector<8x64xf32>
    %22 = tpu.matmul %21, %0, %cst_14 {dimension_numbers = #tpu.dot_dimension_numbers<[1], [0], [0], [1], [0, 0, 1, 1], [], []>} : vector<8x32xbf16>, vector<32x64xbf16>, vector<8x64xf32> -> vector<8x64xf32>
    %23 = vector.broadcast %1 : vector<1x64xf32> to vector<8x64xf32>
    %24 = arith.addf %22, %23 : vector<8x64xf32>
    %cst_15 = arith.constant 0.000000e+00 : f32
    %25 = vector.broadcast %cst_15 : f32 to vector<8x64xf32>
    %26 = arith.maximumf %24, %25 : vector<8x64xf32>
    %27 = arith.truncf %26 : vector<8x64xf32> to vector<8x64xbf16>
    %cst_16 = arith.constant dense<0.000000e+00> : vector<8x32xf32>
    %28 = tpu.matmul %27, %2, %cst_16 {dimension_numbers = #tpu.dot_dimension_numbers<[1], [0], [0], [1], [0, 0, 1, 1], [], []>} : vector<8x64xbf16>, vector<64x32xbf16>, vector<8x32xf32> -> vector<8x32xf32>
    %29 = vector.broadcast %3 : vector<1x32xf32> to vector<8x32xf32>
    %30 = arith.addf %28, %29 : vector<8x32xf32>
    %31 = arith.negf %30 : vector<8x32xf32>
    %32 = math.exp %31 : vector<8x32xf32>
    %cst_17 = arith.constant 1.000000e+00 : f32
    %33 = vector.broadcast %cst_17 : f32 to vector<8x32xf32>
    %34 = arith.addf %33, %32 : vector<8x32xf32>
    %35 = arith.divf %33, %34 : vector<8x32xf32>
    %36 = arith.mulf %19, %35 : vector<8x32xf32>
    %cst_18 = arith.constant dense<0.000000e+00> : vector<8xf32>
    %37 = vector.multi_reduction <add>, %36, %cst_18 [1] : vector<8x32xf32> to vector<8xf32>
    %38 = arith.negf %37 : vector<8xf32>
    %39 = math.exp %38 : vector<8xf32>
    %cst_19 = arith.constant 1.000000e+00 : f32
    %40 = vector.broadcast %cst_19 : f32 to vector<8xf32>
    %41 = arith.addf %40, %39 : vector<8xf32>
    %42 = arith.divf %40, %41 : vector<8xf32>
    %43 = vector.shape_cast %42 : vector<8xf32> to vector<1x8xf32>
    %c0_20 = arith.constant 0 : index
    %c0_21 = arith.constant 0 : index
    %44 = vector.load %arg7[%c0_20, %c0_21] : memref<1x8xf32, #tpu.memory_space<vmem>>, vector<1x8xf32>
    tpu.vector_store %arg7[%c0_20, %c0_21], %43 {strides = array<i32>} : memref<1x8xf32, #tpu.memory_space<vmem>>, vector<1x8xf32>,
    return
  }
  func.func @transform_0(%arg0: i32) -> (i32, i32) {
    %c0_i32 = arith.constant 0 : i32
    %c0_i32_0 = arith.constant 0 : i32
    return %arg0, %c0_i32 : i32, i32
  }
  func.func @transform_1(%arg0: i32) -> (i32, i32) {
    %c0_i32 = arith.constant 0 : i32
    %c0_i32_0 = arith.constant 0 : i32
    return %arg0, %c0_i32 : i32, i32
  }
  func.func @transform_2(%arg0: i32) -> (i32, i32) {
    %c0_i32 = arith.constant 0 : i32
    %c0_i32_0 = arith.constant 0 : i32
    %c0_i32_1 = arith.constant 0 : i32
    return %c0_i32, %c0_i32_0 : i32, i32
  }
  func.func @transform_3(%arg0: i32) -> (i32, i32) {
    %c0_i32 = arith.constant 0 : i32
    %c0_i32_0 = arith.constant 0 : i32
    %c0_i32_1 = arith.constant 0 : i32
    return %c0_i32, %c0_i32_0 : i32, i32
  }
  func.func @transform_4(%arg0: i32) -> (i32, i32) {
    %c0_i32 = arith.constant 0 : i32
    %c0_i32_0 = arith.constant 0 : i32
    %c0_i32_1 = arith.constant 0 : i32
    return %c0_i32, %c0_i32_0 : i32, i32
  }
  func.func @transform_5(%arg0: i32) -> (i32, i32) {
    %c0_i32 = arith.constant 0 : i32
    %c0_i32_0 = arith.constant 0 : i32
    %c0_i32_1 = arith.constant 0 : i32
    return %c0_i32, %c0_i32_0 : i32, i32
  }
  func.func @transform_6(%arg0: i32) -> (i32, i32) {
    %c0_i32 = arith.constant 0 : i32
    %c0_i32_0 = arith.constant 0 : i32
    return %c0_i32, %arg0 : i32, i32
  }
}

</mosaic_0001>

<llo_original>
// kernel: matching_model.1
$region0: #{matching_model.1}
  #allocation0 [shape = 'u32[]', space=smem, size = 0x4, offset = 0x4, fixed_abs, tag = 'smem constant byte address 0x4 - core index']
  #allocation1 [shape = 'u32[144,128]{1,0:T(1,128)}', space=vmem, size = 0x12000, scoped, tag = 'internal scratch']
  %s0 = inlined_call_operand.vmem [shape: f32[8,32], index: 0, kind: input, shape index: {}]
  %s1 = inlined_call_operand.vmem [shape: f32[8,32], index: 1, kind: input, shape index: {}]
  %s2 = inlined_call_operand.vmem [shape: bf16[32,64], index: 2, kind: input, shape index: {}]
  %s3 = inlined_call_operand.vmem [shape: f32[1,64], index: 3, kind: input, shape index: {}]
  %s4 = inlined_call_operand.vmem [shape: bf16[64,32], index: 4, kind: input, shape index: {}]
  %s5 = inlined_call_operand.vmem [shape: f32[1,32], index: 5, kind: input, shape index: {}]
  %s6 = inlined_call_operand.hbm [shape: f32[1,8], index: 6, kind: output, shape index: {}]
  %s7 = sld [smem:[#allocation0]]
  $region34: #{matching_model.1} parent=0
    _
  %s9 = ssub.s32 1, %s7
  %s10 = scalar_select 0, %s9, %s7
  $region1: #{matching_model.1} parent=0
    #allocation2 [shape = 'u8[512]{0}', space=vmem, size = 0x400, scoped, tag = 'output window, operand 0, single buffered']
    #allocation3 [shape = 's32[1]{0}', space=sflag, size = 0x4, scoped, tag = 'scoped memory for matching_model.1']
    %11 = vsyncpa [#allocation3], 0
    // Predicated region
    $region2: #{matching_model.1} parent=1 // pred_check
      _
    $region3: #{matching_model.1} parent=1 // pred_check_branch
      %13 = sbr.rel (0) target = $region5
    $region4: #{matching_model.1} parent=1 // pred_region
      _
    $region5: #{matching_model.1} parent=1 // pred_fallthru
      _
    // Predicated region
    $region6: #{matching_model.1} parent=1 // pred_check
      _
    $region7: #{matching_model.1} parent=1 // pred_check_branch
      %15 = sbr.rel (0) target = $region9
    $region8: #{matching_model.1} parent=1 // pred_region
      _
    $region9: #{matching_model.1} parent=1 // pred_fallthru
      _
    // Predicated region
    $region10: #{matching_model.1} parent=1 // pred_check
      _
    $region11: #{matching_model.1} parent=1 // pred_check_branch
      %17 = sbr.rel (0) target = $region13
    $region12: #{matching_model.1} parent=1 // pred_region
      _
    $region13: #{matching_model.1} parent=1 // pred_fallthru
      _
    // Predicated region
    $region14: #{matching_model.1} parent=1 // pred_check
      _
    $region15: #{matching_model.1} parent=1 // pred_check_branch
      %19 = sbr.rel (0) target = $region17
    $region16: #{matching_model.1} parent=1 // pred_region
      _
    $region17: #{matching_model.1} parent=1 // pred_fallthru
      _
    // Predicated region
    $region18: #{matching_model.1} parent=1 // pred_check
      _
    $region19: #{matching_model.1} parent=1 // pred_check_branch
      %21 = sbr.rel (0) target = $region21
    $region20: #{matching_model.1} parent=1 // pred_region
      _
    $region21: #{matching_model.1} parent=1 // pred_fallthru
      _
    // Predicated region
    $region22: #{matching_model.1} parent=1 // pred_check
      _
    $region23: #{matching_model.1} parent=1 // pred_check_branch
      %23 = sbr.rel (0) target = $region25
    $region24: #{matching_model.1} parent=1 // pred_region
      _
    $region25: #{matching_model.1} parent=1 // pred_fallthru
      _
    %v25 = vld [vmem:[%s2] sm:$0xf]
    %v26 = vld [vmem:[%s2 + $0x4] sm:$0xf]
    %v27 = vld [vmem:[%s2 + $0x8] sm:$0xf]
    %v28 = vld [vmem:[%s2 + $0xc] sm:$0xf]
    %v29 = vld [vmem:[%s3] sm:$0x1]
    %v30 = vld [vmem:[%s4] sm:$0xf]
    %v31 = vld [vmem:[%s4 + $0x4] sm:$0xf]
    %v32 = vld [vmem:[%s4 + $0x8] sm:$0xf]
    %v33 = vld [vmem:[%s4 + $0xc] sm:$0xf]
    %v34 = vld [vmem:[%s4 + $0x10] sm:$0xf]
    %v35 = vld [vmem:[%s4 + $0x14] sm:$0xf]
    %v36 = vld [vmem:[%s4 + $0x18] sm:$0xf]
    %v37 = vld [vmem:[%s4 + $0x1c] sm:$0xf]
    %v38 = vld [vmem:[%s5] sm:$0x1]
    %v39 = vld [vmem:[%s0] sm:$0xff]
    %v40 = vpack.c.bf16 %v39, %v39
    %v42 = vlaneseq
    %v43 = vshrl.u32 %v42, 7
    %v44 = vsub.s32 0, %v43
    %v45 = vrot.slane %v29, %v44
    %v51 = vunpack.c.l.b16 %v25
    %v52 = vunpack.c.l.b16 %v26
    %v53 = vunpack.c.l.b16 %v27
    %v54 = vunpack.c.l.b16 %v28
    %v55 = vpack.c.b16 %v52, %v51
    %v56 = vpack.c.b16 %v54, %v53
    %vm59 = vcmask 261120
    %v61 = vsel %vm59, %v40, 0
    %63 = vmatprep.subr.bf16.mxu0 0
    %64 = vmatpush1.bf16.msra.mxu0 0
    %65 = vmatprep.subr.bf16.mxu0 0
    %66 = vmatpush1.bf16.msra.mxu0 0
    %67 = vmatprep.subr.bf16.mxu0 0
    %68 = vmatpush1.bf16.msra.mxu0 0
    %69 = vmatprep.subr.bf16.mxu0 0
    %70 = vmatpush1.bf16.msra.mxu0 0
    %71 = vmatprep.subr.bf16.mxu0 0
    %72 = vmatpush1.bf16.msra.mxu0 0
    %73 = vmatprep.subr.bf16.mxu0 0
    %74 = vmatpush1.bf16.msra.mxu0 0
    %75 = vmatprep.subr.bf16.mxu0 0
    %76 = vmatpush1.bf16.msra.mxu0 %v56
    %77 = vmatprep.subr.bf16.mxu0 0
    %78 = vmatpush1.bf16.msra.mxu0 %v55
    %79 = vmatprep.subr.bf16.mxu0 0
    %80 = vmatpush2.bf16.msra.mxu0 0
    %81 = vmatprep.subr.bf16.mxu0 0
    %82 = vmatpush2.bf16.msra.mxu0 0
    %83 = vmatprep.subr.bf16.mxu0 0
    %84 = vmatpush2.bf16.msra.mxu0 0
    %85 = vmatprep.subr.bf16.mxu0 0
    %86 = vmatpush2.bf16.msra.mxu0 0
    %87 = vmatprep.subr.bf16.mxu0 0
    %88 = vmatpush2.bf16.msra.mxu0 0
    %89 = vmatprep.subr.bf16.mxu0 0
    %90 = vmatpush2.bf16.msra.mxu0 0
    %91 = vmatprep.subr.bf16.mxu0 0
    %92 = vmatpush2.bf16.msra.mxu0 0
    %93 = vmatprep.subr.bf16.mxu0 0
    %94 = vmatpush2.bf16.msra.mxu0 0
    %95 = vmatprep.mubr.bf16.mxu0 0
    %96 = vmatmul.mubr.bf16.gmra.mxu0 %v61
    %v97 = vpop.f32.mrf.mxu0
    %v98 = vadd.f32 %v45, %v97
    %v99 = vpop.f32.mrf.mxu0
    %v100 = vpop.f32.mrf.mxu0
    %v101 = vpop.f32.mrf.mxu0
    %102 = vdwg.mxu0
    %v103 = vmax.f32 %v98, 0.0
    %v104 = vpack.c.bf16 %v103, %v103
    %v106 = vlaneseq
    %v107 = vshrl.u32 %v106, 7
    %v108 = vsub.s32 0, %v107
    %v109 = vrot.slane %v38, %v108
    %v119 = vunpack.c.l.b16 %v30
    %v120 = vunpack.c.l.b16 %v31
    %v121 = vunpack.c.l.b16 %v32
    %v122 = vunpack.c.l.b16 %v33
    %v123 = vunpack.c.l.b16 %v34
    %v124 = vunpack.c.l.b16 %v35
    %v125 = vunpack.c.l.b16 %v36
    %v126 = vunpack.c.l.b16 %v37
    %v127 = vpack.c.b16 %v120, %v119
    %v128 = vpack.c.b16 %v122, %v121
    %v129 = vpack.c.b16 %v124, %v123
    %v130 = vpack.c.b16 %v126, %v125
    %vm135 = vcmask 523264
    %v137 = vsel %vm135, %v104, 0
    %139 = vmatprep.subr.bf16.mxu0 0
    %140 = vmatpush1.bf16.msra.mxu0 0
    %141 = vmatprep.subr.bf16.mxu0 0
    %142 = vmatpush1.bf16.msra.mxu0 0
    %143 = vmatprep.subr.bf16.mxu0 0
    %144 = vmatpush1.bf16.msra.mxu0 0
    %145 = vmatprep.subr.bf16.mxu0 0
    %146 = vmatpush1.bf16.msra.mxu0 0
    %147 = vmatprep.subr.bf16.mxu0 0
    %148 = vmatpush1.bf16.msra.mxu0 %v130
    %149 = vmatprep.subr.bf16.mxu0 0
    %150 = vmatpush1.bf16.msra.mxu0 %v129
    %151 = vmatprep.subr.bf16.mxu0 0
    %152 = vmatpush1.bf16.msra.mxu0 %v128
    %153 = vmatprep.subr.bf16.mxu0 0
    %154 = vmatpush1.bf16.msra.mxu0 %v127
    %155 = vmatprep.subr.bf16.mxu0 0
    %156 = vmatpush2.bf16.msra.mxu0 0
    %157 = vmatprep.subr.bf16.mxu0 0
    %158 = vmatpush2.bf16.msra.mxu0 0
    %159 = vmatprep.subr.bf16.mxu0 0
    %160 = vmatpush2.bf16.msra.mxu0 0
    %161 = vmatprep.subr.bf16.mxu0 0
    %162 = vmatpush2.bf16.msra.mxu0 0
    %163 = vmatprep.subr.bf16.mxu0 0
    %164 = vmatpush2.bf16.msra.mxu0 0
    %165 = vmatprep.subr.bf16.mxu0 0
    %166 = vmatpush2.bf16.msra.mxu0 0
    %167 = vmatprep.subr.bf16.mxu0 0
    %168 = vmatpush2.bf16.msra.mxu0 0
    %169 = vmatprep.subr.bf16.mxu0 0
    %170 = vmatpush2.bf16.msra.mxu0 0
    %171 = vmatprep.mubr.bf16.mxu0 0
    %172 = vmatmul.mubr.bf16.gmra.mxu0 %v137
    %v173 = vpop.f32.mrf.mxu0
    %v174 = vadd.f32 %v109, %v173
    %v175 = vpop.f32.mrf.mxu0
    %v176 = vpop.f32.mrf.mxu0
    %v177 = vpop.f32.mrf.mxu0
    %178 = vdwg.mxu0
    %v179 = vxor.u32 %v174, 2147483648
    %v180 = vmul.f32 %v179, 1.442695
    %v181 = vpow.pop %v180
    %v182 = vadd.f32 %v181, 1.0
    %v183 = vrcp.pop %v182
    %v184 = vmul.f32 1.0, %v183
    %v185 = vld [vmem:[%s1] sm:$0xff]
    %v186 = vpack.c.bf16 %v185, %v185
    %v188 = vsel %vm59, %v186, 0
    %190 = vmatprep.subr.bf16.mxu0 0
    %191 = vmatpush1.bf16.msra.mxu0 0
    %192 = vmatprep.subr.bf16.mxu0 0
    %193 = vmatpush1.bf16.msra.mxu0 0
    %194 = vmatprep.subr.bf16.mxu0 0
    %195 = vmatpush1.bf16.msra.mxu0 0
    %196 = vmatprep.subr.bf16.mxu0 0
    %197 = vmatpush1.bf16.msra.mxu0 0
    %198 = vmatprep.subr.bf16.mxu0 0
    %199 = vmatpush1.bf16.msra.mxu0 0
    %200 = vmatprep.subr.bf16.mxu0 0
    %201 = vmatpush1.bf16.msra.mxu0 0
    %202 = vmatprep.subr.bf16.mxu0 0
    %203 = vmatpush1.bf16.msra.mxu0 %v56
    %204 = vmatprep.subr.bf16.mxu0 0
    %205 = vmatpush1.bf16.msra.mxu0 %v55
    %206 = vmatprep.subr.bf16.mxu0 0
    %207 = vmatpush2.bf16.msra.mxu0 0
    %208 = vmatprep.subr.bf16.mxu0 0
    %209 = vmatpush2.bf16.msra.mxu0 0
    %210 = vmatprep.subr.bf16.mxu0 0
    %211 = vmatpush2.bf16.msra.mxu0 0
    %212 = vmatprep.subr.bf16.mxu0 0
    %213 = vmatpush2.bf16.msra.mxu0 0
    %214 = vmatprep.subr.bf16.mxu0 0
    %215 = vmatpush2.bf16.msra.mxu0 0
    %216 = vmatprep.subr.bf16.mxu0 0
    %217 = vmatpush2.bf16.msra.mxu0 0
    %218 = vmatprep.subr.bf16.mxu0 0
    %219 = vmatpush2.bf16.msra.mxu0 0
    %220 = vmatprep.subr.bf16.mxu0 0
    %221 = vmatpush2.bf16.msra.mxu0 0
    %222 = vmatprep.mubr.bf16.mxu0 0
    %223 = vmatmul.mubr.bf16.gmra.mxu0 %v188
    %v224 = vpop.f32.mrf.mxu0
    %v225 = vadd.f32 %v45, %v224
    %v226 = vpop.f32.mrf.mxu0
    %v227 = vpop.f32.mrf.mxu0
    %v228 = vpop.f32.mrf.mxu0
    %229 = vdwg.mxu0
    %v230 = vmax.f32 %v225, 0.0
    %v231 = vpack.c.bf16 %v230, %v230
    %v233 = vsel %vm135, %v231, 0
    %235 = vmatprep.subr.bf16.mxu0 0
    %236 = vmatpush1.bf16.msra.mxu0 0
    %237 = vmatprep.subr.bf16.mxu0 0
    %238 = vmatpush1.bf16.msra.mxu0 0
    %239 = vmatprep.subr.bf16.mxu0 0
    %240 = vmatpush1.bf16.msra.mxu0 0
    %241 = vmatprep.subr.bf16.mxu0 0
    %242 = vmatpush1.bf16.msra.mxu0 0
    %243 = vmatprep.subr.bf16.mxu0 0
    %244 = vmatpush1.bf16.msra.mxu0 %v130
    %245 = vmatprep.subr.bf16.mxu0 0
    %246 = vmatpush1.bf16.msra.mxu0 %v129
    %247 = vmatprep.subr.bf16.mxu0 0
    %248 = vmatpush1.bf16.msra.mxu0 %v128
    %249 = vmatprep.subr.bf16.mxu0 0
    %250 = vmatpush1.bf16.msra.mxu0 %v127
    %251 = vmatprep.subr.bf16.mxu0 0
    %252 = vmatpush2.bf16.msra.mxu0 0
    %253 = vmatprep.subr.bf16.mxu0 0
    %254 = vmatpush2.bf16.msra.mxu0 0
    %255 = vmatprep.subr.bf16.mxu0 0
    %256 = vmatpush2.bf16.msra.mxu0 0
    %257 = vmatprep.subr.bf16.mxu0 0
    %258 = vmatpush2.bf16.msra.mxu0 0
    %259 = vmatprep.subr.bf16.mxu0 0
    %260 = vmatpush2.bf16.msra.mxu0 0
    %261 = vmatprep.subr.bf16.mxu0 0
    %262 = vmatpush2.bf16.msra.mxu0 0
    %263 = vmatprep.subr.bf16.mxu0 0
    %264 = vmatpush2.bf16.msra.mxu0 0
    %265 = vmatprep.subr.bf16.mxu0 0
    %266 = vmatpush2.bf16.msra.mxu0 0
    %267 = vmatprep.mubr.bf16.mxu0 0
    %268 = vmatmul.mubr.bf16.gmra.mxu0 %v233
    %v269 = vpop.f32.mrf.mxu0
    %v270 = vadd.f32 %v109, %v269
    %v271 = vpop.f32.mrf.mxu0
    %v272 = vpop.f32.mrf.mxu0
    %v273 = vpop.f32.mrf.mxu0
    %274 = vdwg.mxu0
    %v275 = vxor.u32 %v270, 2147483648
    %v276 = vmul.f32 %v275, 1.442695
    %v277 = vpow.pop %v276
    %v278 = vadd.f32 %v277, 1.0
    %v279 = vrcp.pop %v278
    %v280 = vmul.f32 1.0, %v279
    %v281 = vmul.f32 %v184, %v280
    %v282 = vsel %vm59, %v281, 0.0
    %283 = vadd.xlane.f32.xlu0 %v282
    %v284 = vpop.xlane.xlu0 %283
    %v285 = vxor.u32 %v284, 2147483648
    %v286 = vmul.f32 %v285, 1.442695
    %v287 = vpow.pop %v286
    %v288 = vadd.f32 %v287, 1.0
    %v289 = vrcp.pop %v288
    %v290 = vmul.f32 1.0, %v289
    %v292 = vlaneseq
    %v293 = vand.u32 %v292, 127
    %v294 = vlaneseq
    %v295 = vshrl.u32 %v294, 7
    %v296 = vsub.s32 %v293, %v295
    %v297 = vrot.slane %v290, %v296
    %vm299 = vcmask 57344
    %300 = vst.msk [vmem:[#allocation2] sm:$0x1] %vm299, %v297
    // Predicated region
    $region26: #{matching_model.1} parent=1 // pred_check
      _
    $region27: #{matching_model.1} parent=1 // pred_check_branch
      %302 = sbr.rel (0) target = $region29
    $region28: #{matching_model.1} parent=1 // pred_region
      %s304 = ssub.s32 16, 16
      %305 = vsyncadd [#allocation3], %s304
      %s307 = sshll.u32 [#allocation2], 4
      %s308 = int_to_ptr.vmem [resolvable:$true] %s307
      %310 = dma.vmem_to_hbm [thread:$0]  %s308, 16, %s6, [#allocation3]
    $region29: #{matching_model.1} parent=1 // pred_fallthru
      _
    // Predicated region
    $region30: #{matching_model.1} parent=1 // pred_check
      _
    $region31: #{matching_model.1} parent=1 // pred_check_branch
      %312 = sbr.rel (0) target = $region33
    $region32: #{matching_model.1} parent=1 // pred_region
      %313 = dma.done [#allocation3], 16
    $region33: #{matching_model.1} parent=1 // pred_fallthru
      _
    %314 = vsyncpa [#allocation3], 1

</llo_original>
